<compile_context>
chip_gen: v5e
topology: v5e:2x2
jax: 0.10.0
libtpu: 0.0.40
codegen_flags: <defaults>
</compile_context>

<pallas_src>
import numpy as np
import jax
import jax.numpy as jnp
from jax.experimental import pallas as pl
from jax.experimental.pallas import tpu as pltpu

F32 = jnp.float32
HIDDEN = 128          # fixed by the module: Linear(in,128), Linear(128,128)


def _round_up(n, m):
    return ((n + m - 1) // m) * m


def _kernel(betas_ref,                                   # (3,) f32, SMEM (scalar prefetch)
            x_ref, w1_ref, b1_ref, w2_ref, b2_ref, w3_ref, b3_ref,
            out_ref):
    def swish(v, i):
        beta = betas_ref[i]                              # single SMEM scalar read / layer
        # exact sigmoid; pl.reciprocal(..., approx=True) is the cheap EUP
        # alternative if reduced precision is acceptable.
        return v * (1.0 / (1.0 + jnp.exp(-beta * v)))

    x = x_ref[...]                                                         # (BT, IN)
    h = jnp.dot(x, w1_ref[...], preferred_element_type=F32) + b1_ref[...]  # (BT, 128)
    h = swish(h, 0)
    h = jnp.dot(h, w2_ref[...], preferred_element_type=F32) + b2_ref[...]  # (BT, 128)
    h = swish(h, 1)
    y = jnp.dot(h, w3_ref[...], preferred_element_type=F32) + b3_ref[...]  # (BT, OUT*OUT)
    y = swish(y, 2)
    out_ref[...] = y.astype(out_ref.dtype)               # lane-dense store


def sxrnet_linear2_pallas(x, params, output_size, *, b_tile=128):
    """x: (B, input_size) f32 -> (B, output_size, output_size) f32."""
    B, IN = x.shape
    OUT2 = output_size * output_size
    x = x.astype(F32)

    # Batch tile: multiple of 8 sublanes, capped by the (padded) batch size.
    bt = max(8, (min(b_tile, _round_up(B, 8)) // 8) * 8)
    b_pad = _round_up(B, bt)
    if b_pad != B:
        x = jnp.pad(x, ((0, b_pad - B), (0, 0)))
    n_blocks = b_pad // bt

    grid_spec = pltpu.PrefetchScalarGridSpec(
        num_scalar_prefetch=1,                    # betas -> SMEM
        grid=(n_blocks,),
        in_specs=[
            pl.BlockSpec((bt, IN), lambda i, *_: (i, 0)),          # x block
            pl.BlockSpec((IN, HIDDEN), lambda i, *_: (0, 0)),      # W1
            pl.BlockSpec((1, HIDDEN), lambda i, *_: (0, 0)),       # b1
            pl.BlockSpec((HIDDEN, HIDDEN), lambda i, *_: (0, 0)),  # W2
            pl.BlockSpec((1, HIDDEN), lambda i, *_: (0, 0)),       # b2
            pl.BlockSpec((HIDDEN, OUT2), lambda i, *_: (0, 0)),    # W3
            pl.BlockSpec((1, OUT2), lambda i, *_: (0, 0)),         # b3
        ],
        out_specs=pl.BlockSpec((bt, OUT2), lambda i, *_: (i, 0)),
    )

    out_flat = pl.pallas_call(
        _kernel,
        out_shape=jax.ShapeDtypeStruct((b_pad, OUT2), F32),
        grid_spec=grid_spec,
        compiler_params=pltpu.CompilerParams(
            dimension_semantics=("parallel",)),    # v7x: split batch blocks over 2 TCs
    )(params["betas"], x,
      params["W1"], params["b1"], params["W2"], params["b2"],
      params["W3"], params["b3"])

    # Reshape(-1, output_size, output_size) done in XLA, outside the kernel.
    return out_flat[:B].reshape(B, output_size, output_size)


# ----------------------------- parameters ------------------------------------
def init_params(key, input_size, output_size):
    out2 = output_size * output_size
    k = jax.random.split(key, 6)
    p = {}
    p["W1"] = jax.random.normal(k[0], (input_size, HIDDEN), F32) / np.sqrt(input_size)
    p["b1"] = 0.05 * jax.random.normal(k[1], (1, HIDDEN), F32)
    p["W2"] = jax.random.normal(k[2], (HIDDEN, HIDDEN), F32) / np.sqrt(float(HIDDEN))
    p["b2"] = 0.05 * jax.random.normal(k[3], (1, HIDDEN), F32)
    p["W3"] = jax.random.normal(k[4], (HIDDEN, out2), F32) / np.sqrt(float(HIDDEN))
    p["b3"] = 0.05 * jax.random.normal(k[5], (1, out2), F32)
    p["betas"] = jnp.ones((3,), F32)   # torch init: Swish beta = 1.0 for each Swish
    return p


# -------------------------- pure-JAX reference --------------------------------
def reference_forward(x, p, output_size):
    betas = p["betas"]
    hp = jax.lax.Precision.HIGHEST

    def sw(v, i):
        return v * (1.0 / (1.0 + jnp.exp(-betas[i] * v)))

    h = jnp.dot(x, p["W1"], precision=hp) + p["b1"]; h = sw(h, 0)
    h = jnp.dot(h, p["W2"], precision=hp) + p["b2"]; h = sw(h, 1)
    y = jnp.dot(h, p["W3"], precision=hp) + p["b3"]; y = sw(y, 2)
    return y.reshape(-1, output_size, output_size)


if __name__ == "__main__":
    INPUT_SIZE, OUTPUT_SIZE = 8, 16
    B = 16
    key = jax.random.PRNGKey(0)
    k_x, k_p = jax.random.split(key)
    x = jax.random.normal(k_x, (B, INPUT_SIZE), F32)
    params = init_params(k_p, INPUT_SIZE, OUTPUT_SIZE)

    # Multi-block batch grid (b_tile=8 -> grid=(2,)).
    out = jax.block_until_ready(
        sxrnet_linear2_pallas(x, params, OUTPUT_SIZE, b_tile=8))
    ref = jax.block_until_ready(reference_forward(x, params, OUTPUT_SIZE))
    assert out.shape == (B, OUTPUT_SIZE, OUTPUT_SIZE)
    np.testing.assert_allclose(np.asarray(out), np.asarray(ref), rtol=1e-3, atol=1e-3)

    # Ragged batch (padding path) with the default tile size.
    x2 = jax.random.normal(jax.random.PRNGKey(1), (5, INPUT_SIZE), F32)
    out2 = jax.block_until_ready(sxrnet_linear2_pallas(x2, params, OUTPUT_SIZE))
    ref2 = jax.block_until_ready(reference_forward(x2, params, OUTPUT_SIZE))
    assert out2.shape == (5, OUTPUT_SIZE, OUTPUT_SIZE)
    np.testing.assert_allclose(np.asarray(out2), np.asarray(ref2), rtol=1e-3, atol=1e-3)

    print("KERNEL_OK")
</pallas_src>

<mosaic_0001>
module attributes {stable_mosaic.version = 11 : i64} {
  func.func @_kernel(%arg0: i32, %arg1: memref<3xf32, #tpu.memory_space<smem>>, %arg2: memref<8x8xf32, #tpu.memory_space<vmem>>, %arg3: memref<8x128xf32, #tpu.memory_space<vmem>>, %arg4: memref<1x128xf32, #tpu.memory_space<vmem>>, %arg5: memref<128x128xf32, #tpu.memory_space<vmem>>, %arg6: memref<1x128xf32, #tpu.memory_space<vmem>>, %arg7: memref<128x256xf32, #tpu.memory_space<vmem>>, %arg8: memref<1x256xf32, #tpu.memory_space<vmem>>, %arg9: memref<8x256xf32, #tpu.memory_space<vmem>>) attributes {dimension_semantics = [#tpu.dimension_semantics<parallel>], iteration_bounds = array<i64: 2>, scalar_prefetch = 1 : i64, scratch_operands = 0 : i64, tpu.core_type = #tpu.core_type<tc>, window_params = [{transform_indices = @transform_0, window_bounds = array<i64: 8, 8>}, {pipeline_mode = #tpu.pipeline_mode<synchronous>, transform_indices = @transform_1, window_bounds = array<i64: 8, 128>}, {pipeline_mode = #tpu.pipeline_mode<synchronous>, transform_indices = @transform_2, window_bounds = array<i64: 1, 128>}, {pipeline_mode = #tpu.pipeline_mode<synchronous>, transform_indices = @transform_3, window_bounds = array<i64: 128, 128>}, {pipeline_mode = #tpu.pipeline_mode<synchronous>, transform_indices = @transform_4, window_bounds = array<i64: 1, 128>}, {pipeline_mode = #tpu.pipeline_mode<synchronous>, transform_indices = @transform_5, window_bounds = array<i64: 128, 256>}, {pipeline_mode = #tpu.pipeline_mode<synchronous>, transform_indices = @transform_6, window_bounds = array<i64: 1, 256>}, {transform_indices = @transform_7, window_bounds = array<i64: 8, 256>}]} {
    %c0 = arith.constant 0 : index
    %c0_0 = arith.constant 0 : index
    %0 = vector.load %arg2[%c0, %c0_0] : memref<8x8xf32, #tpu.memory_space<vmem>>, vector<8x8xf32>
    %c0_1 = arith.constant 0 : index
    %c0_2 = arith.constant 0 : index
    %1 = vector.load %arg3[%c0_1, %c0_2] : memref<8x128xf32, #tpu.memory_space<vmem>>, vector<8x128xf32>
    %cst = arith.constant dense<0.000000e+00> : vector<8x128xf32>
    %2 = tpu.matmul %0, %1, %cst {dimension_numbers = #tpu.dot_dimension_numbers<[1], [0], [0], [1], [0, 0, 1, 1], [], []>} : vector<8x8xf32>, vector<8x128xf32>, vector<8x128xf32> -> vector<8x128xf32>
    %c0_3 = arith.constant 0 : index
    %c0_4 = arith.constant 0 : index
    %3 = vector.load %arg4[%c0_3, %c0_4] : memref<1x128xf32, #tpu.memory_space<vmem>>, vector<1x128xf32>
    %4 = vector.broadcast %3 : vector<1x128xf32> to vector<8x128xf32>
    %5 = arith.addf %2, %4 : vector<8x128xf32>
    %c0_5 = arith.constant 0 : index
    %6 = memref.load %arg1[%c0_5] : memref<3xf32, #tpu.memory_space<smem>>
    %cst_6 = arith.constant 0.000000e+00 : f32
    %7 = arith.subf %cst_6, %6 : f32
    %8 = vector.broadcast %7 : f32 to vector<8x128xf32>
    %9 = arith.mulf %8, %5 : vector<8x128xf32>
    %10 = math.exp %9 : vector<8x128xf32>
    %cst_7 = arith.constant 1.000000e+00 : f32
    %11 = vector.broadcast %cst_7 : f32 to vector<8x128xf32>
    %12 = arith.addf %11, %10 : vector<8x128xf32>
    %cst_8 = arith.constant 1.000000e+00 : f32
    %13 = vector.broadcast %cst_8 : f32 to vector<8x128xf32>
    %14 = arith.divf %13, %12 : vector<8x128xf32>
    %15 = arith.mulf %5, %14 : vector<8x128xf32>
    %c0_9 = arith.constant 0 : index
    %c0_10 = arith.constant 0 : index
    %16 = vector.load %arg5[%c0_9, %c0_10] : memref<128x128xf32, #tpu.memory_space<vmem>>, vector<128x128xf32>
    %cst_11 = arith.constant dense<0.000000e+00> : vector<8x128xf32>
    %17 = tpu.matmul %15, %16, %cst_11 {dimension_numbers = #tpu.dot_dimension_numbers<[1], [0], [0], [1], [0, 0, 1, 1], [], []>} : vector<8x128xf32>, vector<128x128xf32>, vector<8x128xf32> -> vector<8x128xf32>
    %c0_12 = arith.constant 0 : index
    %c0_13 = arith.constant 0 : index
    %18 = vector.load %arg6[%c0_12, %c0_13] : memref<1x128xf32, #tpu.memory_space<vmem>>, vector<1x128xf32>
    %19 = vector.broadcast %18 : vector<1x128xf32> to vector<8x128xf32>
    %20 = arith.addf %17, %19 : vector<8x128xf32>
    %c1 = arith.constant 1 : index
    %21 = memref.load %arg1[%c1] : memref<3xf32, #tpu.memory_space<smem>>
    %cst_14 = arith.constant 0.000000e+00 : f32
    %22 = arith.subf %cst_14, %21 : f32
    %23 = vector.broadcast %22 : f32 to vector<8x128xf32>
    %24 = arith.mulf %23, %20 : vector<8x128xf32>
    %25 = math.exp %24 : vector<8x128xf32>
    %cst_15 = arith.constant 1.000000e+00 : f32
    %26 = vector.broadcast %cst_15 : f32 to vector<8x128xf32>
    %27 = arith.addf %26, %25 : vector<8x128xf32>
    %cst_16 = arith.constant 1.000000e+00 : f32
    %28 = vector.broadcast %cst_16 : f32 to vector<8x128xf32>
    %29 = arith.divf %28, %27 : vector<8x128xf32>
    %30 = arith.mulf %20, %29 : vector<8x128xf32>
    %c0_17 = arith.constant 0 : index
    %c0_18 = arith.constant 0 : index
    %31 = vector.load %arg7[%c0_17, %c0_18] : memref<128x256xf32, #tpu.memory_space<vmem>>, vector<128x256xf32>
    %cst_19 = arith.constant dense<0.000000e+00> : vector<8x256xf32>
    %32 = tpu.matmul %30, %31, %cst_19 {dimension_numbers = #tpu.dot_dimension_numbers<[1], [0], [0], [1], [0, 0, 1, 1], [], []>} : vector<8x128xf32>, vector<128x256xf32>, vector<8x256xf32> -> vector<8x256xf32>
    %c0_20 = arith.constant 0 : index
    %c0_21 = arith.constant 0 : index
    %33 = vector.load %arg8[%c0_20, %c0_21] : memref<1x256xf32, #tpu.memory_space<vmem>>, vector<1x256xf32>
    %34 = vector.broadcast %33 : vector<1x256xf32> to vector<8x256xf32>
    %35 = arith.addf %32, %34 : vector<8x256xf32>
    %c2 = arith.constant 2 : index
    %36 = memref.load %arg1[%c2] : memref<3xf32, #tpu.memory_space<smem>>
    %cst_22 = arith.constant 0.000000e+00 : f32
    %37 = arith.subf %cst_22, %36 : f32
    %38 = vector.broadcast %37 : f32 to vector<8x256xf32>
    %39 = arith.mulf %38, %35 : vector<8x256xf32>
    %40 = math.exp %39 : vector<8x256xf32>
    %cst_23 = arith.constant 1.000000e+00 : f32
    %41 = vector.broadcast %cst_23 : f32 to vector<8x256xf32>
    %42 = arith.addf %41, %40 : vector<8x256xf32>
    %cst_24 = arith.constant 1.000000e+00 : f32
    %43 = vector.broadcast %cst_24 : f32 to vector<8x256xf32>
    %44 = arith.divf %43, %42 : vector<8x256xf32>
    %45 = arith.mulf %35, %44 : vector<8x256xf32>
    %c0_25 = arith.constant 0 : index
    %c0_26 = arith.constant 0 : index
    %46 = vector.load %arg9[%c0_25, %c0_26] : memref<8x256xf32, #tpu.memory_space<vmem>>, vector<8x256xf32>
    tpu.vector_store %arg9[%c0_25, %c0_26], %45 {strides = array<i32>} : memref<8x256xf32, #tpu.memory_space<vmem>>, vector<8x256xf32>,
    return
  }
  func.func @transform_0(%arg0: i32, %arg1: memref<3xf32, #tpu.memory_space<smem>>) -> (i32, i32) {
    %c0_i32 = arith.constant 0 : i32
    %c0_i32_0 = arith.constant 0 : i32
    return %arg0, %c0_i32 : i32, i32
  }
  func.func @transform_1(%arg0: i32, %arg1: memref<3xf32, #tpu.memory_space<smem>>) -> (i32, i32) {
    %c0_i32 = arith.constant 0 : i32
    %c0_i32_0 = arith.constant 0 : i32
    %c0_i32_1 = arith.constant 0 : i32
    return %c0_i32, %c0_i32_0 : i32, i32
  }
  func.func @transform_2(%arg0: i32, %arg1: memref<3xf32, #tpu.memory_space<smem>>) -> (i32, i32) {
    %c0_i32 = arith.constant 0 : i32
    %c0_i32_0 = arith.constant 0 : i32
    %c0_i32_1 = arith.constant 0 : i32
    return %c0_i32, %c0_i32_0 : i32, i32
  }
  func.func @transform_3(%arg0: i32, %arg1: memref<3xf32, #tpu.memory_space<smem>>) -> (i32, i32) {
    %c0_i32 = arith.constant 0 : i32
    %c0_i32_0 = arith.constant 0 : i32
    %c0_i32_1 = arith.constant 0 : i32
    return %c0_i32, %c0_i32_0 : i32, i32
  }
  func.func @transform_4(%arg0: i32, %arg1: memref<3xf32, #tpu.memory_space<smem>>) -> (i32, i32) {
    %c0_i32 = arith.constant 0 : i32
    %c0_i32_0 = arith.constant 0 : i32
    %c0_i32_1 = arith.constant 0 : i32
    return %c0_i32, %c0_i32_0 : i32, i32
  }
  func.func @transform_5(%arg0: i32, %arg1: memref<3xf32, #tpu.memory_space<smem>>) -> (i32, i32) {
    %c0_i32 = arith.constant 0 : i32
    %c0_i32_0 = arith.constant 0 : i32
    %c0_i32_1 = arith.constant 0 : i32
    return %c0_i32, %c0_i32_0 : i32, i32
  }
  func.func @transform_6(%arg0: i32, %arg1: memref<3xf32, #tpu.memory_space<smem>>) -> (i32, i32) {
    %c0_i32 = arith.constant 0 : i32
    %c0_i32_0 = arith.constant 0 : i32
    %c0_i32_1 = arith.constant 0 : i32
    return %c0_i32, %c0_i32_0 : i32, i32
  }
  func.func @transform_7(%arg0: i32, %arg1: memref<3xf32, #tpu.memory_space<smem>>) -> (i32, i32) {
    %c0_i32 = arith.constant 0 : i32
    %c0_i32_0 = arith.constant 0 : i32
    return %arg0, %c0_i32 : i32, i32
  }
}

</mosaic_0001>

<llo_original>
// kernel: tpu_custom_call.1
$region0: #{tpu_custom_call.1}
  #allocation0 [shape = 'u32[]', space=smem, size = 0x4, offset = 0x4, fixed_abs, tag = 'smem constant byte address 0x4 - core index']
  #allocation1 [shape = 'u32[72,128]{1,0:T(1,128)}', space=vmem, size = 0x9000, scoped, tag = 'internal scratch']
  #allocation2 [shape = 's32[1]{0}', space=sflag, size = 0x4, scoped, tag = 'scoped memory for tpu_custom_call.1']
  #allocation3 [shape = 'u8[512]{0}', space=smem, size = 0x200, scoped, tag = 'prefetched SMEM operand 0']
  %s0 = inlined_call_operand.vmem [shape: f32[3], index: 0, kind: input, shape index: {}]
  %s1 = inlined_call_operand.vmem [shape: f32[16,8], index: 1, kind: input, shape index: {}]
  %s2 = inlined_call_operand.vmem [shape: f32[8,128], index: 2, kind: input, shape index: {}]
  %s3 = inlined_call_operand.vmem [shape: f32[1,128], index: 3, kind: input, shape index: {}]
  %s4 = inlined_call_operand.hbm [shape: f32[128,128], index: 4, kind: input, shape index: {}]
  %s5 = inlined_call_operand.vmem [shape: f32[1,128], index: 5, kind: input, shape index: {}]
  %s6 = inlined_call_operand.hbm [shape: f32[128,256], index: 6, kind: input, shape index: {}]
  %s7 = inlined_call_operand.vmem [shape: f32[1,256], index: 7, kind: input, shape index: {}]
  %s8 = inlined_call_operand.hbm [shape: f32[16,256], index: 8, kind: output, shape index: {}]
  %s9 = sld [smem:[#allocation0]]
  $region69: #{tpu_custom_call.1} parent=0
    _
  %s11 = ssub.s32 1, %s9
  %s12 = scalar_select 0, %s11, %s9
  %s14 = sshll.u32 %s0, 4
  %s15 = int_to_ptr.vmem [resolvable:$true] %s14
  %17 = dma.vmem_to_smem %s15, 16, [#allocation3], [#allocation2]
  %19 = dma.done [#allocation2], 16
  %20 = sfence
  $region1: #{tpu_custom_call.1} parent=0
    #allocation4 [shape = 'u8[65536]{0}', space=vmem, size = 0x10000, scoped, tag = 'input window, operand 4, single buffered']
    #allocation5 [shape = 's32[2]{0}', space=sflag, size = 0x8, scoped, tag = 'scoped memory for tpu_custom_call.1']
    #allocation6 [shape = 's32[2]{0}', space=sflag, size = 0x8, scoped, tag = 'scoped memory for tpu_custom_call.1']
    #allocation7 [shape = 'u8[131072]{0}', space=vmem, size = 0x20000, scoped, tag = 'input window, operand 6, single buffered']
    #allocation8 [shape = 's32[1]{0}', space=sflag, size = 0x4, scoped, tag = 'scoped memory for tpu_custom_call.1']
    #allocation9 [shape = 'u8[16384]{0}', space=vmem, size = 0x4000, scoped, tag = 'output window, operand 0']
    %21 = vsyncpa [#allocation5], 0
    %22 = vsyncpa [#allocation8], 0
    %23 = vsyncpa [#allocation6], 0
    %s24 = scalar_lea.sflag [#allocation6], 1
    %25 = vsyncpa %s24, 0
    loop: start=0, step=1, limit=4
    $region2: #{tpu_custom_call.1} parent=1 // loop_pre_header
      _
    $region3: #{tpu_custom_call.1} parent=1 // loop_header
      %s27 = sphi 0, %s31
      %p28 = scmp.ge.s32.totalorder %s27, 4
      %s37 = sphi 0, %s39
      %s40 = sphi 0, %s37
      %s41 = sphi 0, %s40
      %s57 = sphi 0, %s41
      %s61 = sphi 0, %s61
      %s63 = sphi 0, %s61
      %s64 = sphi 0, %s63
      %s78 = sphi 0, %s64
      %s82 = sphi 0, %s82
      %s84 = sphi 0, %s82
      %s85 = sphi 0, %s84
      %s99 = sphi 0, %s85
      %s103 = sphi 0, %s103
      %s105 = sphi 0, %s103
      %s106 = sphi 0, %s105
      %s120 = sphi 0, %s106
      %s124 = sphi 0, %s124
      %s126 = sphi 0, %s124
      %s127 = sphi 0, %s126
      %s141 = sphi 0, %s127
      %s145 = sphi 0, %s145
      %s147 = sphi 0, %s145
      %s148 = sphi 0, %s147
      %s162 = sphi 0, %s148
      %s166 = sphi 0, %s166
      %s168 = sphi 0, %s166
      %s169 = sphi 0, %s168
      %s183 = sphi 0, %s169
      %s189 = sphi 0, %s191
      %s192 = sphi 0, %s189
      %s193 = sphi 0, %s192
      %s209 = sphi 0, %s193
    $region4: #{tpu_custom_call.1} parent=1 // loop_header_branch
      %30 = sbr.rel (%p28) target = $region8
    $region5: #{tpu_custom_call.1} parent=1 // loop_body
      %s32 = ssub.s32 %s27, 1
      %s33 = ssub.s32 %s27, 2
      %s34 = sadd.s32 %s27, 1
      %s35 = ssub.s32 %s27, %s34
      %p36 = scmp.eq.s32.totalorder %s35, 0
      %s38 = sadd.s32 %s37, 1
      %s39 = scalar_select %p36, %s37, %s38
      %p42 = pneg %p36
      %p43 = scmp.eq.s32.totalorder %s27, 1
      %p44 = por %p42, %p43
      %p45 = scmp.ne.s32.totalorder %s37, %s40
      %p46 = scmp.eq.s32.totalorder %s27, 0
      %p47 = por %p45, %p46
      %p48 = scmp.ne.s32.totalorder %s37, %s40
      %p49 = scmp.eq.s32.totalorder %s32, 1
      %p50 = por %p48, %p49
      %p51 = scmp.ne.s32.totalorder %s40, %s41
      %p52 = scmp.eq.s32.totalorder %s32, 0
      %p53 = por %p51, %p52
      %p54 = scmp.ne.s32.totalorder %s40, %s41
      %p55 = scmp.eq.s32.totalorder %s33, 1
      %p56 = por %p54, %p55
      %p58 = scmp.ne.s32.totalorder %s41, %s57
      %p59 = scmp.eq.s32.totalorder %s33, 0
      %p60 = por %p58, %p59
      %s62 = sadd.s32 %s61, 1
      %p65 = scmp.eq.s32.totalorder %s27, 1
      %p66 = scmp.ne.s32.totalorder %s61, %s63
      %p67 = scmp.eq.s32.totalorder %s27, 0
      %p68 = por %p66, %p67
      %p69 = scmp.ne.s32.totalorder %s61, %s63
      %p70 = scmp.eq.s32.totalorder %s32, 1
      %p71 = por %p69, %p70
      %p72 = scmp.ne.s32.totalorder %s63, %s64
      %p73 = scmp.eq.s32.totalorder %s32, 0
      %p74 = por %p72, %p73
      %p75 = scmp.ne.s32.totalorder %s63, %s64
      %p76 = scmp.eq.s32.totalorder %s33, 1
      %p77 = por %p75, %p76
      %p79 = scmp.ne.s32.totalorder %s64, %s78
      %p80 = scmp.eq.s32.totalorder %s33, 0
      %p81 = por %p79, %p80
      %s83 = sadd.s32 %s82, 1
      %p86 = scmp.eq.s32.totalorder %s27, 1
      %p87 = scmp.ne.s32.totalorder %s82, %s84
      %p88 = scmp.eq.s32.totalorder %s27, 0
      %p89 = por %p87, %p88
      %p90 = scmp.ne.s32.totalorder %s82, %s84
      %p91 = scmp.eq.s32.totalorder %s32, 1
      %p92 = por %p90, %p91
      %p93 = scmp.ne.s32.totalorder %s84, %s85
      %p94 = scmp.eq.s32.totalorder %s32, 0
      %p95 = por %p93, %p94
      %p96 = scmp.ne.s32.totalorder %s84, %s85
      %p97 = scmp.eq.s32.totalorder %s33, 1
      %p98 = por %p96, %p97
      %p100 = scmp.ne.s32.totalorder %s85, %s99
      %p101 = scmp.eq.s32.totalorder %s33, 0
      %p102 = por %p100, %p101
      %s104 = sadd.s32 %s103, 1
      %p107 = scmp.eq.s32.totalorder %s27, 1
      %p108 = scmp.ne.s32.totalorder %s103, %s105
      %p109 = scmp.eq.s32.totalorder %s27, 0
      %p110 = por %p108, %p109
      %p111 = scmp.ne.s32.totalorder %s103, %s105
      %p112 = scmp.eq.s32.totalorder %s32, 1
      %p113 = por %p111, %p112
      %p114 = scmp.ne.s32.totalorder %s105, %s106
      %p115 = scmp.eq.s32.totalorder %s32, 0
      %p116 = por %p114, %p115
      %p117 = scmp.ne.s32.totalorder %s105, %s106
      %p118 = scmp.eq.s32.totalorder %s33, 1
      %p119 = por %p117, %p118
      %p121 = scmp.ne.s32.totalorder %s106, %s120
      %p122 = scmp.eq.s32.totalorder %s33, 0
      %p123 = por %p121, %p122
      %s125 = sadd.s32 %s124, 1
      %p128 = scmp.eq.s32.totalorder %s27, 1
      %p129 = scmp.ne.s32.totalorder %s124, %s126
      %p130 = scmp.eq.s32.totalorder %s27, 0
      %p131 = por %p129, %p130
      %p132 = scmp.ne.s32.totalorder %s124, %s126
      %p133 = scmp.eq.s32.totalorder %s32, 1
      %p134 = por %p132, %p133
      %p135 = scmp.ne.s32.totalorder %s126, %s127
      %p136 = scmp.eq.s32.totalorder %s32, 0
      %p137 = por %p135, %p136
      %p138 = scmp.ne.s32.totalorder %s126, %s127
      %p139 = scmp.eq.s32.totalorder %s33, 1
      %p140 = por %p138, %p139
      %p142 = scmp.ne.s32.totalorder %s127, %s141
      %p143 = scmp.eq.s32.totalorder %s33, 0
      %p144 = por %p142, %p143
      %s146 = sadd.s32 %s145, 1
      %p149 = scmp.eq.s32.totalorder %s27, 1
      %p150 = scmp.ne.s32.totalorder %s145, %s147
      %p151 = scmp.eq.s32.totalorder %s27, 0
      %p152 = por %p150, %p151
      %p153 = scmp.ne.s32.totalorder %s145, %s147
      %p154 = scmp.eq.s32.totalorder %s32, 1
      %p155 = por %p153, %p154
      %p156 = scmp.ne.s32.totalorder %s147, %s148
      %p157 = scmp.eq.s32.totalorder %s32, 0
      %p158 = por %p156, %p157
      %p159 = scmp.ne.s32.totalorder %s147, %s148
      %p160 = scmp.eq.s32.totalorder %s33, 1
      %p161 = por %p159, %p160
      %p163 = scmp.ne.s32.totalorder %s148, %s162
      %p164 = scmp.eq.s32.totalorder %s33, 0
      %p165 = por %p163, %p164
      %s167 = sadd.s32 %s166, 1
      %p170 = scmp.eq.s32.totalorder %s27, 1
      %p171 = scmp.ne.s32.totalorder %s166, %s168
      %p172 = scmp.eq.s32.totalorder %s27, 0
      %p173 = por %p171, %p172
      %p174 = scmp.ne.s32.totalorder %s166, %s168
      %p175 = scmp.eq.s32.totalorder %s32, 1
      %p176 = por %p174, %p175
      %p177 = scmp.ne.s32.totalorder %s168, %s169
      %p178 = scmp.eq.s32.totalorder %s32, 0
      %p179 = por %p177, %p178
      %p180 = scmp.ne.s32.totalorder %s168, %s169
      %p181 = scmp.eq.s32.totalorder %s33, 1
      %p182 = por %p180, %p181
      %p184 = scmp.ne.s32.totalorder %s169, %s183
      %p185 = scmp.eq.s32.totalorder %s33, 0
      %p186 = por %p184, %p185
      %s187 = ssub.s32 %s27, %s34
      %p188 = scmp.eq.s32.totalorder %s187, 0
      %s190 = sadd.s32 %s189, 1
      %s191 = scalar_select %p188, %s189, %s190
      %p194 = pneg %p188
      %p195 = scmp.eq.s32.totalorder %s27, 1
      %p196 = por %p194, %p195
      %p197 = scmp.ne.s32.totalorder %s189, %s192
      %p198 = scmp.eq.s32.totalorder %s27, 0
      %p199 = por %p197, %p198
      %p200 = scmp.ne.s32.totalorder %s189, %s192
      %p201 = scmp.eq.s32.totalorder %s32, 1
      %p202 = por %p200, %p201
      %p203 = scmp.ne.s32.totalorder %s192, %s193
      %p204 = scmp.eq.s32.totalorder %s32, 0
      %p205 = por %p203, %p204
      %p206 = scmp.ne.s32.totalorder %s192, %s193
      %p207 = scmp.eq.s32.totalorder %s33, 1
      %p208 = por %p206, %p207
      %p210 = scmp.ne.s32.totalorder %s193, %s209
      %p211 = scmp.eq.s32.totalorder %s33, 0
      %p212 = por %p210, %p211
      %p213 = scmp.le.s32.totalorder 1, %s27
      %p214 = scmp.lt.s32.totalorder %s27, 3
      %p215 = pnand %p213, %p214
      %p216 = pneg %p215
      // Predicated region
      $region9: #{tpu_custom_call.1} parent=5 // pred_check
        _
      $region10: #{tpu_custom_call.1} parent=5 // pred_check_branch
        %218 = sbr.rel (%p215) target = $region12
      $region11: #{tpu_custom_call.1} parent=5 // pred_region
        %s219 = ssub.s32 %s27, 1
        // Predicated region
        $region13: #{tpu_custom_call.1} parent=11 // pred_check
          %p220 = pneg %p74
        $region14: #{tpu_custom_call.1} parent=11 // pred_check_branch
          %222 = sbr.rel (%p220) target = $region16
        $region15: #{tpu_custom_call.1} parent=11 // pred_region
          _
        $region16: #{tpu_custom_call.1} parent=11 // pred_fallthru
          _
        // Predicated region
        $region17: #{tpu_custom_call.1} parent=11 // pred_check
          %p223 = pneg %p95
        $region18: #{tpu_custom_call.1} parent=11 // pred_check_branch
          %225 = sbr.rel (%p223) target = $region20
        $region19: #{tpu_custom_call.1} parent=11 // pred_region
          _
        $region20: #{tpu_custom_call.1} parent=11 // pred_fallthru
          _
        // Predicated region
        $region21: #{tpu_custom_call.1} parent=11 // pred_check
          %p226 = pneg %p116
        $region22: #{tpu_custom_call.1} parent=11 // pred_check_branch
          %228 = sbr.rel (%p226) target = $region24
        $region23: #{tpu_custom_call.1} parent=11 // pred_region
          %230 = vsyncadd [#allocation5], 0
          %s231 = sshll.u32 %s4, 4
          %s232 = int_to_ptr.hbm [resolvable:$true] %s231
          %s233 = sshll.u32 [#allocation4], 4
          %s234 = int_to_ptr.vmem [resolvable:$true] %s233
          %239 = dma.hbm_to_vmem [thread:$0]  %s232, 2048, %s234, [#allocation5], 128, 128, 8
        $region24: #{tpu_custom_call.1} parent=11 // pred_fallthru
          _
        // Predicated region
        $region25: #{tpu_custom_call.1} parent=11 // pred_check
          %p240 = pneg %p137
        $region26: #{tpu_custom_call.1} parent=11 // pred_check_branch
          %242 = sbr.rel (%p240) target = $region28
        $region27: #{tpu_custom_call.1} parent=11 // pred_region
          _
        $region28: #{tpu_custom_call.1} parent=11 // pred_fallthru
          _
        // Predicated region
        $region29: #{tpu_custom_call.1} parent=11 // pred_check
          %p243 = pneg %p158
        $region30: #{tpu_custom_call.1} parent=11 // pred_check_branch
          %245 = sbr.rel (%p243) target = $region32
        $region31: #{tpu_custom_call.1} parent=11 // pred_region
          %247 = vsyncadd [#allocation8], 0
          %s248 = sshll.u32 %s6, 4
          %s249 = int_to_ptr.hbm [resolvable:$true] %s248
          %s250 = sshll.u32 [#allocation7], 4
          %s251 = int_to_ptr.vmem [resolvable:$true] %s250
          %256 = dma.hbm_to_vmem [thread:$0]  %s249, 4096, %s251, [#allocation8], 256, 256, 16
        $region32: #{tpu_custom_call.1} parent=11 // pred_fallthru
          _
        // Predicated region
        $region33: #{tpu_custom_call.1} parent=11 // pred_check
          %p257 = pneg %p179
        $region34: #{tpu_custom_call.1} parent=11 // pred_check_branch
          %259 = sbr.rel (%p257) target = $region36
        $region35: #{tpu_custom_call.1} parent=11 // pred_region
          _
        $region36: #{tpu_custom_call.1} parent=11 // pred_fallthru
          _
      $region12: #{tpu_custom_call.1} parent=5 // pred_fallthru
        _
      %p260 = scmp.lt.s32.totalorder %s27, 2
      // Predicated region
      $region37: #{tpu_custom_call.1} parent=5 // pred_check
        %p261 = pneg %p260
      $region38: #{tpu_custom_call.1} parent=5 // pred_check_branch
        %263 = sbr.rel (%p261) target = $region40
      $region39: #{tpu_custom_call.1} parent=5 // pred_region
        // Predicated region
        $region41: #{tpu_custom_call.1} parent=39 // pred_check
          %p264 = pneg %p47
        $region42: #{tpu_custom_call.1} parent=39 // pred_check_branch
          %266 = sbr.rel (%p264) target = $region44
        $region43: #{tpu_custom_call.1} parent=39 // pred_region
          %p267 = scmp.lt.s32.totalorder %s27, 1
          %s268 = scalar_select %p267, %s27, 1
          %s269 = smul.addr %s268, 8
          %s270 = scalar_lea.vmem %s1, %s269
        $region44: #{tpu_custom_call.1} parent=39 // pred_fallthru
          _
      $region40: #{tpu_custom_call.1} parent=5 // pred_fallthru
        _
      %p271 = scmp.le.s32.totalorder 1, %s27
      %p272 = scmp.lt.s32.totalorder %s27, 3
      %p273 = pnand %p271, %p272
      %p274 = pneg %p273
      // Predicated region
      $region45: #{tpu_custom_call.1} parent=5 // pred_check
        _
      $region46: #{tpu_custom_call.1} parent=5 // pred_check_branch
        %276 = sbr.rel (%p273) target = $region48
      $region47: #{tpu_custom_call.1} parent=5 // pred_region
        %s277 = ssub.s32 %s27, 1
        // Predicated region
        $region49: #{tpu_custom_call.1} parent=47 // pred_check
          %p278 = pneg %p116
        $region50: #{tpu_custom_call.1} parent=47 // pred_check_branch
          %280 = sbr.rel (%p278) target = $region52
        $region51: #{tpu_custom_call.1} parent=47 // pred_region
          %282 = dma.done [#allocation5], 2048
        $region52: #{tpu_custom_call.1} parent=47 // pred_fallthru
          _
        // Predicated region
        $region53: #{tpu_custom_call.1} parent=47 // pred_check
          %p283 = pneg %p158
        $region54: #{tpu_custom_call.1} parent=47 // pred_check_branch
          %285 = sbr.rel (%p283) target = $region56
        $region55: #{tpu_custom_call.1} parent=47 // pred_region
          %287 = dma.done [#allocation8], 4096
        $region56: #{tpu_custom_call.1} parent=47 // pred_fallthru
          _
        %p288 = scmp.lt.s32.totalorder %s32, 1
        %s289 = scalar_select %p288, %s32, 1
        %s290 = smul.addr %s289, 8
        %s291 = scalar_lea.vmem %s1, %s290
        %p292 = pneg %p53
        %p293 = pneg %p50
        %p294 = pneg %p74
        %p295 = pneg %p71
        %p296 = pneg %p95
        %p297 = pneg %p92
        %p298 = pneg %p116
        %p299 = pneg %p113
        %p300 = pneg %p137
        %p301 = pneg %p134
        %p302 = pneg %p158
        %p303 = pneg %p155
        %p304 = pneg %p179
        %p305 = pneg %p176
        %p306 = pneg %p205
        %p307 = pneg %p202
        %s308 = sand.u32 %s192, 1
        %s309 = scalar_lea.sflag [#allocation6], %s308
        %s310 = sand.u32 %s192, 1
        %s311 = smul.addr %s310, 16
        %s312 = scalar_lea.vmem [#allocation9], %s311
        %p313 = scmp.lt.s32.totalorder %s32, 1
        %s314 = scalar_select %p313, %s32, 1
        %s315 = smul.addr %s314, 8
        %s316 = scalar_lea.vmem %s1, %s315
        %v317 = vld [vmem:[%s316] sm:$0xff]
        %v318 = vld [vmem:[%s2] sm:$0xff]
        %v319 = vld [vmem:[%s3] sm:$0x1]
        %v321 = vperm.slane %v319, 0
        %vm323 = vcmask 64512
        %v325 = vsel %vm323, %v317, 0
        %327 = vmatpush.msra.mxu0 0.0
        %328 = vmatpush.msra.mxu0 0.0
        %329 = vmatpush.msra.mxu0 0.0
        %330 = vmatpush.msra.mxu0 0.0
        %331 = vmatpush.msra.mxu0 0.0
        %332 = vmatpush.msra.mxu0 0.0
        %333 = vmatpush.msra.mxu0 0.0
        %334 = vmatpush.msra.mxu0 0.0
        %335 = vmatpush.msra.mxu0 0.0
        %336 = vmatpush.msra.mxu0 0.0
        %337 = vmatpush.msra.mxu0 0.0
        %338 = vmatpush.msra.mxu0 0.0
        %339 = vmatpush.msra.mxu0 0.0
        %340 = vmatpush.msra.mxu0 0.0
        %341 = vmatpush.msra.mxu0 0.0
        %342 = vmatpush.msra.mxu0 %v318
        %343 = vmatmul.f32.gmra.mxu0 %v325
        %v344 = vpop.f32.mrf.mxu0
        %v345 = vadd.f32 %v321, %v344
        %346 = vdwg.mxu0
        %s347 = sld [smem:[#allocation3]]
        %s348 = ssub.f32 0.0, %s347
        %v349 = vstv %s348
        %v350 = vmul.f32 %v349, %v345
        %v351 = vmul.f32 %v350, 1.442695
        %v352 = vpow.pop %v351
        %v353 = vadd.f32 %v352, 1.0
        %v354 = vrcp.pop %v353
        %v355 = vmul.f32 %v353, %v354
        %v356 = vsub.f32 1.0, %v355
        %v357 = vmul.f32 %v354, %v356
        %v358 = vadd.f32 %v354, %v357
        %vm359 = vweird.f32 %v353
        %vm360 = vweird.f32 %v354
        %vm361 = vmor %vm359, %vm360
        %v362 = vsel %vm361, %v354, %v358
        %v363 = vand.u32 2147483647, %v353
        %vm364 = vcmp.eq.f32.partialorder %v363, 8.507059e+37
        %v365 = vand.u32 %v353, 2147483648
        %v366 = vor.u32 1.1754944e-38, %v365
        %v367 = vsel %vm364, %v366, %v362
        %v368 = vmul.f32 1.0, %v367
        %v369 = vmul.f32 %v345, %v368
        %v370 = vld [vmem:[#allocation4] sm:$0xff]
        %v371 = vld [vmem:[#allocation4 + $0x8] sm:$0xff]
        %v372 = vld [vmem:[#allocation4 + $0x10] sm:$0xff]
        %v373 = vld [vmem:[#allocation4 + $0x18] sm:$0xff]
        %v374 = vld [vmem:[#allocation4 + $0x20] sm:$0xff]
        %v375 = vld [vmem:[#allocation4 + $0x28] sm:$0xff]
        %v376 = vld [vmem:[#allocation4 + $0x30] sm:$0xff]
        %v377 = vld [vmem:[#allocation4 + $0x38] sm:$0xff]
        %v378 = vld [vmem:[#allocation4 + $0x40] sm:$0xff]
        %v379 = vld [vmem:[#allocation4 + $0x48] sm:$0xff]
        %v380 = vld [vmem:[#allocation4 + $0x50] sm:$0xff]
        %v381 = vld [vmem:[#allocation4 + $0x58] sm:$0xff]
        %v382 = vld [vmem:[#allocation4 + $0x60] sm:$0xff]
        %v383 = vld [vmem:[#allocation4 + $0x68] sm:$0xff]
        %v384 = vld [vmem:[#allocation4 + $0x70] sm:$0xff]
        %v385 = vld [vmem:[#allocation4 + $0x78] sm:$0xff]
        %v386 = vld [vmem:[%s5] sm:$0x1]
        %v388 = vperm.slane %v386, 0
        %390 = vmatpush.msra.mxu0 %v385
        %391 = vmatpush.msra.mxu0 %v384
        %392 = vmatpush.msra.mxu0 %v383
        %393 = vmatpush.msra.mxu0 %v382
        %394 = vmatpush.msra.mxu0 %v381
        %395 = vmatpush.msra.mxu0 %v380
        %396 = vmatpush.msra.mxu0 %v379
        %397 = vmatpush.msra.mxu0 %v378
        %398 = vmatpush.msra.mxu0 %v377
        %399 = vmatpush.msra.mxu0 %v376
        %400 = vmatpush.msra.mxu0 %v375
        %401 = vmatpush.msra.mxu0 %v374
        %402 = vmatpush.msra.mxu0 %v373
        %403 = vmatpush.msra.mxu0 %v372
        %404 = vmatpush.msra.mxu0 %v371
        %405 = vmatpush.msra.mxu0 %v370
        %406 = vmatmul.f32.gmra.mxu0 %v369
        %v407 = vpop.f32.mrf.mxu0
        %v408 = vadd.f32 %v388, %v407
        %409 = vdwg.mxu0
        %s410 = sld [smem:[#allocation3 + $0x1]]
        %s411 = ssub.f32 0.0, %s410
        %v412 = vstv %s411
        %v413 = vmul.f32 %v412, %v408
        %v414 = vmul.f32 %v413, 1.442695
        %v415 = vpow.pop %v414
        %v416 = vadd.f32 %v415, 1.0
        %v417 = vrcp.pop %v416
        %v418 = vmul.f32 %v416, %v417
        %v419 = vsub.f32 1.0, %v418
        %v420 = vmul.f32 %v417, %v419
        %v421 = vadd.f32 %v417, %v420
        %vm422 = vweird.f32 %v416
        %vm423 = vweird.f32 %v417
        %vm424 = vmor %vm422, %vm423
        %v425 = vsel %vm424, %v417, %v421
        %v426 = vand.u32 2147483647, %v416
        %vm427 = vcmp.eq.f32.partialorder %v426, 8.507059e+37
        %v428 = vand.u32 %v416, 2147483648
        %v429 = vor.u32 1.1754944e-38, %v428
        %v430 = vsel %vm427, %v429, %v425
        %v431 = vmul.f32 1.0, %v430
        %v432 = vmul.f32 %v408, %v431
        %v433 = vld [vmem:[#allocation7] sm:$0xff]
        %v434 = vld [vmem:[#allocation7 + $0x8] sm:$0xff]
        %v435 = vld [vmem:[#allocation7 + $0x10] sm:$0xff]
        %v436 = vld [vmem:[#allocation7 + $0x18] sm:$0xff]
        %v437 = vld [vmem:[#allocation7 + $0x20] sm:$0xff]
        %v438 = vld [vmem:[#allocation7 + $0x28] sm:$0xff]
        %v439 = vld [vmem:[#allocation7 + $0x30] sm:$0xff]
        %v440 = vld [vmem:[#allocation7 + $0x38] sm:$0xff]
        %v441 = vld [vmem:[#allocation7 + $0x40] sm:$0xff]
        %v442 = vld [vmem:[#allocation7 + $0x48] sm:$0xff]
        %v443 = vld [vmem:[#allocation7 + $0x50] sm:$0xff]
        %v444 = vld [vmem:[#allocation7 + $0x58] sm:$0xff]
        %v445 = vld [vmem:[#allocation7 + $0x60] sm:$0xff]
        %v446 = vld [vmem:[#allocation7 + $0x68] sm:$0xff]
        %v447 = vld [vmem:[#allocation7 + $0x70] sm:$0xff]
        %v448 = vld [vmem:[#allocation7 + $0x78] sm:$0xff]
        %v449 = vld [vmem:[#allocation7 + $0x80] sm:$0xff]
        %v450 = vld [vmem:[#allocation7 + $0x88] sm:$0xff]
        %v451 = vld [vmem:[#allocation7 + $0x90] sm:$0xff]
        %v452 = vld [vmem:[#allocation7 + $0x98] sm:$0xff]
        %v453 = vld [vmem:[#allocation7 + $0xa0] sm:$0xff]
        %v454 = vld [vmem:[#allocation7 + $0xa8] sm:$0xff]
        %v455 = vld [vmem:[#allocation7 + $0xb0] sm:$0xff]
        %v456 = vld [vmem:[#allocation7 + $0xb8] sm:$0xff]
        %v457 = vld [vmem:[#allocation7 + $0xc0] sm:$0xff]
        %v458 = vld [vmem:[#allocation7 + $0xc8] sm:$0xff]
        %v459 = vld [vmem:[#allocation7 + $0xd0] sm:$0xff]
        %v460 = vld [vmem:[#allocation7 + $0xd8] sm:$0xff]
        %v461 = vld [vmem:[#allocation7 + $0xe0] sm:$0xff]
        %v462 = vld [vmem:[#allocation7 + $0xe8] sm:$0xff]
        %v463 = vld [vmem:[#allocation7 + $0xf0] sm:$0xff]
        %v464 = vld [vmem:[#allocation7 + $0xf8] sm:$0xff]
        %v465 = vld [vmem:[%s7] sm:$0x3]
        %v467 = vperm.slane %v465, 0
        %v468 = vperm.slane %v465, 1
        %471 = vmatpush.msra.mxu0 %v463
        %472 = vmatpush.msra.mxu0 %v461
        %473 = vmatpush.msra.mxu0 %v459
        %474 = vmatpush.msra.mxu0 %v457
        %475 = vmatpush.msra.mxu0 %v455
        %476 = vmatpush.msra.mxu0 %v453
        %477 = vmatpush.msra.mxu0 %v451
        %478 = vmatpush.msra.mxu0 %v449
        %479 = vmatpush.msra.mxu0 %v447
        %480 = vmatpush.msra.mxu0 %v445
        %481 = vmatpush.msra.mxu0 %v443
        %482 = vmatpush.msra.mxu0 %v441
        %483 = vmatpush.msra.mxu0 %v439
        %484 = vmatpush.msra.mxu0 %v437
        %485 = vmatpush.msra.mxu0 %v435
        %486 = vmatpush.msra.mxu0 %v433
        %487 = vmatmul.f32.gmra.mxu0 %v432
        %v488 = vpop.f32.mrf.mxu0
        %v489 = vadd.f32 %v467, %v488
        %490 = vdwg.mxu0
        %491 = vmatpush.msra.mxu0 %v464
        %492 = vmatpush.msra.mxu0 %v462
        %493 = vmatpush.msra.mxu0 %v460
        %494 = vmatpush.msra.mxu0 %v458
        %495 = vmatpush.msra.mxu0 %v456
        %496 = vmatpush.msra.mxu0 %v454
        %497 = vmatpush.msra.mxu0 %v452
        %498 = vmatpush.msra.mxu0 %v450
        %499 = vmatpush.msra.mxu0 %v448
        %500 = vmatpush.msra.mxu0 %v446
        %501 = vmatpush.msra.mxu0 %v444
        %502 = vmatpush.msra.mxu0 %v442
        %503 = vmatpush.msra.mxu0 %v440
        %504 = vmatpush.msra.mxu0 %v438
        %505 = vmatpush.msra.mxu0 %v436
        %506 = vmatpush.msra.mxu0 %v434
        %507 = vmatmul.f32.gmra.mxu0 %v432
        %v508 = vpop.f32.mrf.mxu0
        %v509 = vadd.f32 %v468, %v508
        %510 = vdwg.mxu0
        %s511 = sld [smem:[#allocation3 + $0x2]]
        %s512 = ssub.f32 0.0, %s511
        %v513 = vstv %s512
        %v514 = vmul.f32 %v513, %v489
        %v515 = vmul.f32 %v513, %v509
        %v516 = vmul.f32 %v514, 1.442695
        %v517 = vpow.pop %v516
        %v518 = vmul.f32 %v515, 1.442695
        %v519 = vpow.pop %v518
        %v520 = vadd.f32 %v517, 1.0
        %v521 = vadd.f32 %v519, 1.0
        %v522 = vrcp.pop %v520
        %v523 = vmul.f32 %v520, %v522
        %v524 = vsub.f32 1.0, %v523
        %v525 = vmul.f32 %v522, %v524
        %v526 = vadd.f32 %v522, %v525
        %vm527 = vweird.f32 %v520
        %vm528 = vweird.f32 %v522
        %vm529 = vmor %vm527, %vm528
        %v530 = vsel %vm529, %v522, %v526
        %v531 = vand.u32 2147483647, %v520
        %vm532 = vcmp.eq.f32.partialorder %v531, 8.507059e+37
        %v533 = vand.u32 %v520, 2147483648
        %v534 = vor.u32 1.1754944e-38, %v533
        %v535 = vsel %vm532, %v534, %v530
        %v536 = vmul.f32 1.0, %v535
        %v537 = vrcp.pop %v521
        %v538 = vmul.f32 %v521, %v537
        %v539 = vsub.f32 1.0, %v538
        %v540 = vmul.f32 %v537, %v539
        %v541 = vadd.f32 %v537, %v540
        %vm542 = vweird.f32 %v521
        %vm543 = vweird.f32 %v537
        %vm544 = vmor %vm542, %vm543
        %v545 = vsel %vm544, %v537, %v541
        %v546 = vand.u32 2147483647, %v521
        %vm547 = vcmp.eq.f32.partialorder %v546, 8.507059e+37
        %v548 = vand.u32 %v521, 2147483648
        %v549 = vor.u32 1.1754944e-38, %v548
        %v550 = vsel %vm547, %v549, %v545
        %v551 = vmul.f32 1.0, %v550
        %v552 = vmul.f32 %v489, %v536
        %v553 = vmul.f32 %v509, %v551
        %554 = vst [vmem:[%s312] sm:$0xff] %v552
        %555 = vst [vmem:[%s312 + $0x8] sm:$0xff] %v553
        %s556 = sand.u32 %s192, 1
        %s557 = scalar_lea.sflag [#allocation6], %s556
        %s558 = sand.u32 %s192, 1
        %s559 = smul.addr %s558, 16
        %s560 = scalar_lea.vmem [#allocation9], %s559
        // Predicated region
        $region57: #{tpu_custom_call.1} parent=47 // pred_check
          %p561 = pneg %p202
        $region58: #{tpu_custom_call.1} parent=47 // pred_check_branch
          %563 = sbr.rel (%p561) target = $region60
        $region59: #{tpu_custom_call.1} parent=47 // pred_region
          %565 = vsyncadd %s557, 0
          %s566 = smul.addr %s32, 2
          %s567 = smul.addr %s566, 8
          %s568 = scalar_lea.hbm %s8, %s567
          %s570 = sshll.u32 %s560, 4
          %s571 = int_to_ptr.vmem [resolvable:$true] %s570
          %s572 = sshll.u32 %s568, 4
          %s573 = int_to_ptr.hbm [resolvable:$true] %s572
          %575 = dma.vmem_to_hbm [thread:$0]  %s571, 256, %s573, %s557
        $region60: #{tpu_custom_call.1} parent=47 // pred_fallthru
          _
      $region48: #{tpu_custom_call.1} parent=5 // pred_fallthru
        _
      %p576 = scmp.le.s32.totalorder 2, %s27
      // Predicated region
      $region61: #{tpu_custom_call.1} parent=5 // pred_check
        %p577 = pneg %p576
      $region62: #{tpu_custom_call.1} parent=5 // pred_check_branch
        %579 = sbr.rel (%p577) target = $region64
      $region63: #{tpu_custom_call.1} parent=5 // pred_region
        %s580 = ssub.s32 %s27, 2
        // Predicated region
        $region65: #{tpu_custom_call.1} parent=63 // pred_check
          %p581 = pneg %p208
        $region66: #{tpu_custom_call.1} parent=63 // pred_check_branch
          %583 = sbr.rel (%p581) target = $region68
        $region67: #{tpu_custom_call.1} parent=63 // pred_region
          %s584 = sand.u32 %s193, 1
          %s585 = scalar_lea.sflag [#allocation6], %s584
          %s586 = sand.u32 %s193, 1
          %s587 = smul.addr %s586, 16
          %s588 = scalar_lea.vmem [#allocation9], %s587
          %590 = dma.done %s585, 256
        $region68: #{tpu_custom_call.1} parent=63 // pred_fallthru
          _
      $region64: #{tpu_custom_call.1} parent=5 // pred_fallthru
        _
    $region6: #{tpu_custom_call.1} parent=1 // loop_footer
      %s31 = sadd.s32 1, %s27
    $region7: #{tpu_custom_call.1} parent=1 // loop_footer_branch
      %26 = sbr.rel target = $region3
    $region8: #{tpu_custom_call.1} parent=1 // loop_exit
      _
    %591 = vsyncpa [#allocation5], 1
    %s592 = scalar_lea.sflag [#allocation5], 1
    %593 = vsyncpa %s592, 1
    %594 = vsyncpa [#allocation8], 1
    %595 = vsyncpa [#allocation6], 1
    %s596 = scalar_lea.sflag [#allocation6], 1
    %597 = vsyncpa %s596, 1

</llo_original>
